<compile_context>
chip_gen: v7x
topology: tpu7x:2x2x1
jax: 0.10.0
libtpu: 0.0.40
codegen_flags: <defaults>
</compile_context>

<pallas_src>
import functools

import jax
import jax.numpy as jnp
from jax.experimental import pallas as pl
from jax.experimental.pallas import tpu as pltpu


def _round_up(x, m):
    return (x + m - 1) // m * m


def _conv_rowmm_kernel(x_ref, w_ref, b_ref, o_ref, *, TH, kh_starts):
    """One grid step computes a (TH, OW*Cout) output row-tile with one matmul.

    x_ref : (1, 1, TIN, Wp*Cin)     bf16 VMEM (auto-pipelined halo row tile)
    w_ref : (KH*Wp*Cin, OW*Cout)    bf16 VMEM (resident block-Toeplitz weight)
    b_ref : (1, OW*Cout)            f32  VMEM (bias replicated over OW)
    o_ref : (1, TH, OW*Cout)        out dtype VMEM (auto-pipelined, lane dense)
    """
    # KH row-shifted views of the tile; lane dim stays Wp*Cin (lane dense),
    # all slices are contiguous (no strided sublane access).
    pieces = [x_ref[0, 0, pl.ds(start, TH), :] for start in kh_starts]
    patch = pieces[0] if len(pieces) == 1 else jnp.concatenate(pieces, axis=-1)
    # Single fused MXU matmul; f32 accumulation entirely in vregs.
    acc = jnp.dot(patch, w_ref[...], preferred_element_type=jnp.float32)
    acc = acc + b_ref[...]
    o_ref[0] = acc.astype(o_ref.dtype)


def conv_layer_forward(x_nchw, weight_oihw, bias, *, stride=1, padding=0,
                       compute_dtype=jnp.bfloat16,
                       vmem_budget_bytes=6 << 20):
    """Pallas implementation of nn.Conv2d(in, out, k, stride, padding)(x)."""
    N, Cin, H, W = x_nchw.shape
    Cout, Cin_w, KH, KW = weight_oihw.shape
    assert Cin == Cin_w, "channel mismatch"

    OH = (H + 2 * padding - KH) // stride + 1
    OW = (W + 2 * padding - KW) // stride + 1
    Wp = W + 2 * padding
    WCIN = Wp * Cin              # input lane dim (flattened W x Cin)
    NCOL = OW * Cout             # output lane dim (flattened OW x Cout)
    KROW = KH * WCIN             # contraction dim of the fused matmul

    out_bpe = jnp.dtype(x_nchw.dtype).itemsize
    in_bpe = jnp.dtype(compute_dtype).itemsize

    def _tile_bytes(th):
        tin = (th - 1 + KH) if stride == 1 else KH * th
        return (2 * tin * WCIN * in_bpe        # input block (double buffered)
                + 2 * th * NCOL * out_bpe      # output block (double buffered)
                + 2 * KROW * NCOL * in_bpe     # resident Toeplitz weight
                + 2 * NCOL * 4)                # bias

    # Row-tile choice: whole image if it fits the VMEM budget (R == 1 is the
    # common small-image case), otherwise the largest multiple-of-8 tile.
    if _tile_bytes(OH) <= vmem_budget_bytes:
        TH = OH
    else:
        TH = max(8, (OH // 2) // 8 * 8)
        while TH > 8 and _tile_bytes(TH) > vmem_budget_bytes:
            TH -= 8
    TH = max(1, min(TH, OH))

    OH_pad = _round_up(OH, TH)
    R = OH_pad // TH

    if stride == 1:
        TIN = TH - 1 + KH                          # contiguous halo rows
        kh_starts = tuple(range(KH))
    else:
        TIN = KH * TH                              # per-kh contiguous rows
        kh_starts = tuple(k * TH for k in range(KH))

    Hp_needed = (OH_pad - 1) * stride + KH
    pad_bottom = padding + max(Hp_needed - (H + 2 * padding), 0)

    # Input: NCHW -> NHWC -> spatial zero-pad -> bf16 -> flatten (W, Cin).
    x_nhwc = jnp.transpose(x_nchw, (0, 2, 3, 1))
    x_pad = jnp.pad(x_nhwc, ((0, 0), (padding, pad_bottom),
                             (padding, padding), (0, 0))).astype(compute_dtype)
    Hp = x_pad.shape[1]
    xf = x_pad.reshape(N, Hp, WCIN)

    if stride == 1 and R == 1 and Hp == TIN:
        x_tiles = xf.reshape(N, 1, TIN, WCIN)      # free view, no copy
    else:
        # Materialize (overlapping) halo row-tiles so BlockSpec blocks are
        # disjoint and fully auto-pipelined.
        if stride == 1:
            per_tile = jnp.arange(TIN)
        else:
            per_tile = (jnp.arange(KH)[:, None]
                        + jnp.arange(TH)[None, :] * stride).reshape(-1)
        rows_idx = jnp.arange(R)[:, None] * (TH * stride) + per_tile[None, :]
        x_tiles = xf[:, rows_idx, :]               # (N, R, TIN, WCIN)

    # Block-Toeplitz weight:
    #   Wbig[kh*Wp*Cin + w*Cin + ci, ow*Cout + co]
    #     = weight[co, ci, kh, w - ow*stride]   (0 outside the tap range)
    w_t = jnp.transpose(weight_oihw, (2, 3, 1, 0)).astype(jnp.float32)  # (KH,KW,Cin,Cout)
    w_pos = jnp.arange(Wp)[:, None, None]
    ow_pos = jnp.arange(OW)[None, :, None]
    kw_pos = jnp.arange(KW)[None, None, :]
    onehot = (w_pos == ow_pos * stride + kw_pos).astype(jnp.float32)    # (Wp, OW, KW)
    w_big = jnp.einsum('wok,hkic->hwioc', onehot, w_t)                  # (KH,Wp,Cin,OW,Cout)
    w_big = w_big.reshape(KROW, NCOL).astype(compute_dtype)

    b_row = jnp.tile(bias.astype(jnp.float32), OW).reshape(1, NCOL)

    kernel = functools.partial(_conv_rowmm_kernel, TH=TH, kh_starts=kh_starts)

    out = pl.pallas_call(
        kernel,
        out_shape=jax.ShapeDtypeStruct((N, OH_pad, NCOL), x_nchw.dtype),
        grid=(N, R),
        in_specs=[
            pl.BlockSpec((1, 1, TIN, WCIN), lambda n, r: (n, r, 0, 0)),
            pl.BlockSpec((KROW, NCOL), lambda n, r: (0, 0)),
            pl.BlockSpec((1, NCOL), lambda n, r: (0, 0)),
        ],
        out_specs=pl.BlockSpec((1, TH, NCOL), lambda n, r: (n, r, 0)),
        compiler_params=pltpu.CompilerParams(
            # Every grid step is independent (no cross-step state), so both
            # axes are megacore-splittable on v7x.
            dimension_semantics=("parallel", "parallel")),
    )(x_tiles, w_big, b_row)

    out = out[:, :OH, :].reshape(N, OH, OW, Cout)   # drop row pad, unflatten
    return jnp.transpose(out, (0, 3, 1, 2))          # NHWC -> NCHW


if __name__ == "__main__":
    # ConvLayer(in_channels=4, out_channels=8, kernel_size=3, stride=1, padding=1)
    in_channels, out_channels, kernel_size = 4, 8, 3
    stride, padding = 1, 1
    N, H, W = 2, 16, 16

    key = jax.random.PRNGKey(0)
    kx, kw_, kb = jax.random.split(key, 3)

    x = jax.random.normal(kx, (N, in_channels, H, W), dtype=jnp.float32)
    fan_in = in_channels * kernel_size * kernel_size
    bound = 1.0 / (fan_in ** 0.5)
    weight = jax.random.uniform(kw_, (out_channels, in_channels,
                                      kernel_size, kernel_size),
                                minval=-bound, maxval=bound, dtype=jnp.float32)
    bias = jax.random.uniform(kb, (out_channels,),
                              minval=-bound, maxval=bound, dtype=jnp.float32)

    fwd = jax.jit(functools.partial(conv_layer_forward,
                                    stride=stride, padding=padding))
    out = jax.block_until_ready(fwd(x, weight, bias))

    # Reference with identical math (bf16 operands, f32 accumulation).
    ref = jax.lax.conv_general_dilated(
        x.astype(jnp.bfloat16), weight.astype(jnp.bfloat16),
        window_strides=(stride, stride),
        padding=[(padding, padding), (padding, padding)],
        dimension_numbers=("NCHW", "OIHW", "NCHW"),
        preferred_element_type=jnp.float32,
    ) + bias.reshape(1, out_channels, 1, 1)

    assert out.shape == (N, out_channels, H, W), out.shape
    assert jnp.allclose(out, ref, atol=2e-3, rtol=2e-3), \
        float(jnp.max(jnp.abs(out - ref)))
    print("KERNEL_OK")
</pallas_src>

<mosaic_0001>
module attributes {stable_mosaic.version = 11 : i64} {
  func.func @_conv_rowmm_kernel(%arg0: i32, %arg1: i32, %arg2: memref<1x1x18x72xbf16, #tpu.memory_space<vmem>>, %arg3: memref<216x128xbf16, #tpu.memory_space<vmem>>, %arg4: memref<1x128xf32, #tpu.memory_space<vmem>>, %arg5: memref<1x16x128xf32, #tpu.memory_space<vmem>>) attributes {dimension_semantics = [#tpu.dimension_semantics<parallel>, #tpu.dimension_semantics<parallel>], iteration_bounds = array<i64: 2, 1>, scalar_prefetch = 0 : i64, scratch_operands = 0 : i64, tpu.core_type = #tpu.core_type<tc>, window_params = [{transform_indices = @transform_0, window_bounds = array<i64: 1, 1, 18, 72>}, {pipeline_mode = #tpu.pipeline_mode<synchronous>, transform_indices = @transform_1, window_bounds = array<i64: 216, 128>}, {pipeline_mode = #tpu.pipeline_mode<synchronous>, transform_indices = @transform_2, window_bounds = array<i64: 1, 128>}, {transform_indices = @transform_3, window_bounds = array<i64: 1, 16, 128>}]} {
    %c0 = arith.constant 0 : index
    %c0_0 = arith.constant 0 : index
    %c0_1 = arith.constant 0 : index
    %c0_2 = arith.constant 0 : index
    %0 = vector.load %arg2[%c0, %c0_0, %c0_1, %c0_2] : memref<1x1x18x72xbf16, #tpu.memory_space<vmem>>, vector<1x1x16x72xbf16>
    %1 = vector.shape_cast %0 : vector<1x1x16x72xbf16> to vector<16x72xbf16>
    %c0_3 = arith.constant 0 : index
    %c0_4 = arith.constant 0 : index
    %c1 = arith.constant 1 : index
    %c0_5 = arith.constant 0 : index
    %2 = vector.load %arg2[%c0_3, %c0_4, %c1, %c0_5] : memref<1x1x18x72xbf16, #tpu.memory_space<vmem>>, vector<1x1x16x72xbf16>
    %3 = vector.shape_cast %2 : vector<1x1x16x72xbf16> to vector<16x72xbf16>
    %c0_6 = arith.constant 0 : index
    %c0_7 = arith.constant 0 : index
    %c2 = arith.constant 2 : index
    %c0_8 = arith.constant 0 : index
    %4 = vector.load %arg2[%c0_6, %c0_7, %c2, %c0_8] : memref<1x1x18x72xbf16, #tpu.memory_space<vmem>>, vector<1x1x16x72xbf16>
    %5 = vector.shape_cast %4 : vector<1x1x16x72xbf16> to vector<16x72xbf16>
    %6 = tpu.concatenate %1, %3, %5 in 1 : vector<16x72xbf16>, vector<16x72xbf16>, vector<16x72xbf16> -> vector<16x216xbf16>
    %c0_9 = arith.constant 0 : index
    %c0_10 = arith.constant 0 : index
    %7 = vector.load %arg3[%c0_9, %c0_10] : memref<216x128xbf16, #tpu.memory_space<vmem>>, vector<216x128xbf16>
    %cst = arith.constant dense<0.000000e+00> : vector<16x128xf32>
    %8 = tpu.matmul %6, %7, %cst {dimension_numbers = #tpu.dot_dimension_numbers<[1], [0], [0], [1], [0, 0, 1, 1], [], []>} : vector<16x216xbf16>, vector<216x128xbf16>, vector<16x128xf32> -> vector<16x128xf32>
    %c0_11 = arith.constant 0 : index
    %c0_12 = arith.constant 0 : index
    %9 = vector.load %arg4[%c0_11, %c0_12] : memref<1x128xf32, #tpu.memory_space<vmem>>, vector<1x128xf32>
    %10 = vector.broadcast %9 : vector<1x128xf32> to vector<16x128xf32>
    %11 = arith.addf %8, %10 : vector<16x128xf32>
    %c0_13 = arith.constant 0 : index
    %c0_14 = arith.constant 0 : index
    %c0_15 = arith.constant 0 : index
    %12 = vector.load %arg5[%c0_13, %c0_14, %c0_15] : memref<1x16x128xf32, #tpu.memory_space<vmem>>, vector<1x16x128xf32>
    %13 = vector.shape_cast %12 : vector<1x16x128xf32> to vector<16x128xf32>
    %14 = vector.shape_cast %11 : vector<16x128xf32> to vector<1x16x128xf32>
    tpu.vector_store %arg5[%c0_13, %c0_14, %c0_15], %14 {strides = array<i32>} : memref<1x16x128xf32, #tpu.memory_space<vmem>>, vector<1x16x128xf32>,
    return
  }
  func.func @transform_0(%arg0: i32, %arg1: i32) -> (i32, i32, i32, i32) {
    %c0_i32 = arith.constant 0 : i32
    %c0_i32_0 = arith.constant 0 : i32
    %c0_i32_1 = arith.constant 0 : i32
    return %arg0, %arg1, %c0_i32, %c0_i32_0 : i32, i32, i32, i32
  }
  func.func @transform_1(%arg0: i32, %arg1: i32) -> (i32, i32) {
    %c0_i32 = arith.constant 0 : i32
    %c0_i32_0 = arith.constant 0 : i32
    %c0_i32_1 = arith.constant 0 : i32
    return %c0_i32, %c0_i32_0 : i32, i32
  }
  func.func @transform_2(%arg0: i32, %arg1: i32) -> (i32, i32) {
    %c0_i32 = arith.constant 0 : i32
    %c0_i32_0 = arith.constant 0 : i32
    %c0_i32_1 = arith.constant 0 : i32
    return %c0_i32, %c0_i32_0 : i32, i32
  }
  func.func @transform_3(%arg0: i32, %arg1: i32) -> (i32, i32, i32) {
    %c0_i32 = arith.constant 0 : i32
    %c0_i32_0 = arith.constant 0 : i32
    return %arg0, %arg1, %c0_i32 : i32, i32, i32
  }
}

</mosaic_0001>

<llo_original>
// kernel: tile.8
$region0: #{tile.8}
  #allocation0 [shape = 's32[1]{0}', space=sflag, size = 0x4, scoped, tag = 'scoped memory for tile.8']
  %s0 = inlined_call_operand.vmem [shape: f32[8], index: 0, kind: input, shape index: {}]
  %s1 = inlined_call_operand.vmem [shape: f32[16,8], index: 1, kind: output, shape index: {}]
  // Predicated region
  $region2: #{tile.8} parent=0 // pred_check
    _
  $region3: #{tile.8} parent=0 // pred_check_branch
    %3 = sbr.rel (0) target = $region5
  $region4: #{tile.8} parent=0 // pred_region
    _
  $region5: #{tile.8} parent=0 // pred_fallthru
    _
  %v4 = vld [vmem:[%s0] ss:$0 sm:$0xff]
  %5 = vst [vmem:[%s1] sm:$0xff] %v4
  %s6 = scalar_lea.vmem %s1, 8
  %7 = vst [vmem:[%s6] sm:$0xff] %v4

// kernel: tile.9
$region0: #{tile.9}
  %s0 = inlined_call_operand.vmem [shape: f32[16,8], index: 0, kind: input, shape index: {}]
  %s1 = inlined_call_operand.vmem [shape: f32[1,128], index: 1, kind: output, shape index: {}]
  $region1: #{tile.9} parent=0
    #allocation0 [shape = 'u8[4096]{0}', space=vmem, size = 0x1000, scoped, tag = 'scoped mem for output reshape']
    %v2 = vld [vmem:[%s0] sm:$0x1]
    %vm3 = vcmask 64512
    %4 = vst.msk [vmem:[#allocation0] sm:$0x1] %vm3, %v2
    %s5 = scalar_lea.vmem %s0, 15
    %v6 = vld [vmem:[%s5] sm:$0x1]
    %7 = vrot.lane.b32.xlu0 %v6, 120
    %v8 = vpop.permute.xlu0 %7
    %vm9 = vcmask 1048512
    %10 = vst.msk [vmem:[#allocation0] sm:$0x1] %vm9, %v8
    %s11 = scalar_lea.vmem %s0, 14
    %v12 = vld [vmem:[%s11] sm:$0x1]
    %13 = vrot.lane.b32.xlu0 %v12, 112
    %v14 = vpop.permute.xlu0 %13
    %vm15 = vcmask 982912
    %16 = vst.msk [vmem:[#allocation0] sm:$0x1] %vm15, %v14
    %s17 = scalar_lea.vmem %s0, 13
    %v18 = vld [vmem:[%s17] sm:$0x1]
    %19 = vrot.lane.b32.xlu0 %v18, 104
    %v20 = vpop.permute.xlu0 %19
    %vm21 = vcmask 917312
    %22 = vst.msk [vmem:[#allocation0] sm:$0x1] %vm21, %v20
    %s23 = scalar_lea.vmem %s0, 12
    %v24 = vld [vmem:[%s23] sm:$0x1]
    %25 = vrot.lane.b32.xlu0 %v24, 96
    %v26 = vpop.permute.xlu0 %25
    %vm27 = vcmask 851712
    %28 = vst.msk [vmem:[#allocation0] sm:$0x1] %vm27, %v26
    %s29 = scalar_lea.vmem %s0, 11
    %v30 = vld [vmem:[%s29] sm:$0x1]
    %31 = vrot.lane.b32.xlu0 %v30, 88
    %v32 = vpop.permute.xlu0 %31
    %vm33 = vcmask 786112
    %34 = vst.msk [vmem:[#allocation0] sm:$0x1] %vm33, %v32
    %s35 = scalar_lea.vmem %s0, 10
    %v36 = vld [vmem:[%s35] sm:$0x1]
    %37 = vrot.lane.b32.xlu0 %v36, 80
    %v38 = vpop.permute.xlu0 %37
    %vm39 = vcmask 720512
    %40 = vst.msk [vmem:[#allocation0] sm:$0x1] %vm39, %v38
    %s41 = scalar_lea.vmem %s0, 9
    %v42 = vld [vmem:[%s41] sm:$0x1]
    %43 = vrot.lane.b32.xlu0 %v42, 72
    %v44 = vpop.permute.xlu0 %43
    %vm45 = vcmask 654912
    %46 = vst.msk [vmem:[#allocation0] sm:$0x1] %vm45, %v44
    %s47 = scalar_lea.vmem %s0, 8
    %v48 = vld [vmem:[%s47] sm:$0x1]
    %49 = vrot.lane.b32.xlu0 %v48, 64
    %v50 = vpop.permute.xlu0 %49
    %vm51 = vcmask 589312
    %52 = vst.msk [vmem:[#allocation0] sm:$0x1] %vm51, %v50
    %s53 = scalar_lea.vmem %s0, 7
    %v54 = vld [vmem:[%s53] sm:$0x1]
    %55 = vrot.lane.b32.xlu0 %v54, 56
    %v56 = vpop.permute.xlu0 %55
    %vm57 = vcmask 523712
    %58 = vst.msk [vmem:[#allocation0] sm:$0x1] %vm57, %v56
    %s59 = scalar_lea.vmem %s0, 6
    %v60 = vld [vmem:[%s59] sm:$0x1]
    %61 = vrot.lane.b32.xlu0 %v60, 48
    %v62 = vpop.permute.xlu0 %61
    %vm63 = vcmask 458112
    %64 = vst.msk [vmem:[#allocation0] sm:$0x1] %vm63, %v62
    %s65 = scalar_lea.vmem %s0, 5
    %v66 = vld [vmem:[%s65] sm:$0x1]
    %67 = vrot.lane.b32.xlu0 %v66, 40
    %v68 = vpop.permute.xlu0 %67
    %vm69 = vcmask 392512
    %70 = vst.msk [vmem:[#allocation0] sm:$0x1] %vm69, %v68
    %s71 = scalar_lea.vmem %s0, 4
    %v72 = vld [vmem:[%s71] sm:$0x1]
    %73 = vrot.lane.b32.xlu0 %v72, 32
    %v74 = vpop.permute.xlu0 %73
    %vm75 = vcmask 326912
    %76 = vst.msk [vmem:[#allocation0] sm:$0x1] %vm75, %v74
    %s77 = scalar_lea.vmem %s0, 3
    %v78 = vld [vmem:[%s77] sm:$0x1]
    %79 = vrot.lane.b32.xlu0 %v78, 24
    %v80 = vpop.permute.xlu0 %79
    %vm81 = vcmask 261312
    %82 = vst.msk [vmem:[#allocation0] sm:$0x1] %vm81, %v80
    %s83 = scalar_lea.vmem %s0, 2
    %v84 = vld [vmem:[%s83] sm:$0x1]
    %85 = vrot.lane.b32.xlu0 %v84, 16
    %v86 = vpop.permute.xlu0 %85
    %vm87 = vcmask 195712
    %88 = vst.msk [vmem:[#allocation0] sm:$0x1] %vm87, %v86
    %s89 = scalar_lea.vmem %s0, 1
    %v90 = vld [vmem:[%s89] sm:$0x1]
    %91 = vrot.lane.b32.xlu0 %v90, 8
    %v92 = vpop.permute.xlu0 %91
    %vm93 = vcmask 130112
    %94 = vst.msk [vmem:[#allocation0] sm:$0x1] %vm93, %v92
    %s96 = sshllo.u32 0, 1
    %v98 = vld [vmem:[#allocation0] sm:%s96]
    %s99 = sshllo.u32 0, 1
    %100 = vst [vmem:[%s1] sm:%s99] %v98

// kernel: conv_layer_forward.1
$region0: #{conv_layer_forward.1}
  #allocation0 [shape = 'u32[]', space=smem, size = 0x4, offset = 0x4, fixed_abs, tag = 'smem constant byte address 0x4 - core index']
  #allocation1 [shape = 'u32[144,128]{1,0:T(1,128)}', space=vmem, size = 0x12000, scoped, tag = 'internal scratch']
  %s0 = inlined_call_operand.vmem [shape: bf16[2,1,18,72], index: 0, kind: input, shape index: {}]
  %s1 = inlined_call_operand.vmem [shape: bf16[216,128], index: 1, kind: input, shape index: {}]
  %s2 = inlined_call_operand.vmem [shape: f32[1,128], index: 2, kind: input, shape index: {}]
  %s3 = inlined_call_operand.vmem [shape: f32[2,16,128], index: 3, kind: output, shape index: {}]
  %s4 = sld [smem:[#allocation0]]
  $region45: #{conv_layer_forward.1} parent=0
    _
  %s6 = ssub.s32 1, %s4
  %s7 = scalar_select 0, %s6, %s4
  loop: start=0, step=1, limit=4
  $region2: #{conv_layer_forward.1} parent=0 // loop_pre_header
    _
  $region3: #{conv_layer_forward.1} parent=0 // loop_header
    %s9 = sphi 0, %s13
    %p10 = scmp.ge.s32.totalorder %s9, 4
    %s16 = sphi 0, %s28
    %s17 = sphi 0, %s24
    %s18 = sphi 0, %s16
    %s19 = sphi 0, %s17
    %s20 = sphi 0, %s18
    %s21 = sphi 0, %s19
    %s33 = sphi 0, %s35
    %s36 = sphi 0, %s33
    %s37 = sphi 0, %s36
    %s53 = sphi 0, %s37
    %s57 = sphi 0, %s57
    %s59 = sphi 0, %s57
    %s60 = sphi 0, %s59
    %s74 = sphi 0, %s60
    %s78 = sphi 0, %s78
    %s80 = sphi 0, %s78
    %s81 = sphi 0, %s80
    %s95 = sphi 0, %s81
    %s103 = sphi 0, %s105
    %s106 = sphi 0, %s103
    %s107 = sphi 0, %s106
    %s123 = sphi 0, %s107
  $region4: #{conv_layer_forward.1} parent=0 // loop_header_branch
    %12 = sbr.rel (%p10) target = $region8
  $region5: #{conv_layer_forward.1} parent=0 // loop_body
    %s14 = ssub.s32 %s9, 1
    %s15 = ssub.s32 %s9, 2
    %s22 = sadd.s32 1, %s17
    %p23 = scmp.ge.s32.totalorder %s22, 1
    %s24 = scalar_select %p23, 0, %s22
    %s25 = sadd.s32 1, %s16
    %s26 = scalar_select %p23, %s25, %s16
    %p27 = scmp.ge.s32.totalorder %s26, 2
    %s28 = scalar_select %p27, 0, %s26
    %s29 = ssub.s32 %s16, %s28
    %s30 = ssub.s32 %s17, %s24
    %s31 = sor.u32 %s29, %s30
    %p32 = scmp.eq.s32.totalorder %s31, 0
    %s34 = sadd.s32 %s33, 1
    %s35 = scalar_select %p32, %s33, %s34
    %p38 = pneg %p32
    %p39 = scmp.eq.s32.totalorder %s9, 1
    %p40 = por %p38, %p39
    %p41 = scmp.ne.s32.totalorder %s33, %s36
    %p42 = scmp.eq.s32.totalorder %s9, 0
    %p43 = por %p41, %p42
    %p44 = scmp.ne.s32.totalorder %s33, %s36
    %p45 = scmp.eq.s32.totalorder %s14, 1
    %p46 = por %p44, %p45
    %p47 = scmp.ne.s32.totalorder %s36, %s37
    %p48 = scmp.eq.s32.totalorder %s14, 0
    %p49 = por %p47, %p48
    %p50 = scmp.ne.s32.totalorder %s36, %s37
    %p51 = scmp.eq.s32.totalorder %s15, 1
    %p52 = por %p50, %p51
    %p54 = scmp.ne.s32.totalorder %s37, %s53
    %p55 = scmp.eq.s32.totalorder %s15, 0
    %p56 = por %p54, %p55
    %s58 = sadd.s32 %s57, 1
    %p61 = scmp.eq.s32.totalorder %s9, 1
    %p62 = scmp.ne.s32.totalorder %s57, %s59
    %p63 = scmp.eq.s32.totalorder %s9, 0
    %p64 = por %p62, %p63
    %p65 = scmp.ne.s32.totalorder %s57, %s59
    %p66 = scmp.eq.s32.totalorder %s14, 1
    %p67 = por %p65, %p66
    %p68 = scmp.ne.s32.totalorder %s59, %s60
    %p69 = scmp.eq.s32.totalorder %s14, 0
    %p70 = por %p68, %p69
    %p71 = scmp.ne.s32.totalorder %s59, %s60
    %p72 = scmp.eq.s32.totalorder %s15, 1
    %p73 = por %p71, %p72
    %p75 = scmp.ne.s32.totalorder %s60, %s74
    %p76 = scmp.eq.s32.totalorder %s15, 0
    %p77 = por %p75, %p76
    %s79 = sadd.s32 %s78, 1
    %p82 = scmp.eq.s32.totalorder %s9, 1
    %p83 = scmp.ne.s32.totalorder %s78, %s80
    %p84 = scmp.eq.s32.totalorder %s9, 0
    %p85 = por %p83, %p84
    %p86 = scmp.ne.s32.totalorder %s78, %s80
    %p87 = scmp.eq.s32.totalorder %s14, 1
    %p88 = por %p86, %p87
    %p89 = scmp.ne.s32.totalorder %s80, %s81
    %p90 = scmp.eq.s32.totalorder %s14, 0
    %p91 = por %p89, %p90
    %p92 = scmp.ne.s32.totalorder %s80, %s81
    %p93 = scmp.eq.s32.totalorder %s15, 1
    %p94 = por %p92, %p93
    %p96 = scmp.ne.s32.totalorder %s81, %s95
    %p97 = scmp.eq.s32.totalorder %s15, 0
    %p98 = por %p96, %p97
    %s99 = ssub.s32 %s16, %s28
    %s100 = ssub.s32 %s17, %s24
    %s101 = sor.u32 %s99, %s100
    %p102 = scmp.eq.s32.totalorder %s101, 0
    %s104 = sadd.s32 %s103, 1
    %s105 = scalar_select %p102, %s103, %s104
    %p108 = pneg %p102
    %p109 = scmp.eq.s32.totalorder %s9, 1
    %p110 = por %p108, %p109
    %p111 = scmp.ne.s32.totalorder %s103, %s106
    %p112 = scmp.eq.s32.totalorder %s9, 0
    %p113 = por %p111, %p112
    %p114 = scmp.ne.s32.totalorder %s103, %s106
    %p115 = scmp.eq.s32.totalorder %s14, 1
    %p116 = por %p114, %p115
    %p117 = scmp.ne.s32.totalorder %s106, %s107
    %p118 = scmp.eq.s32.totalorder %s14, 0
    %p119 = por %p117, %p118
    %p120 = scmp.ne.s32.totalorder %s106, %s107
    %p121 = scmp.eq.s32.totalorder %s15, 1
    %p122 = por %p120, %p121
    %p124 = scmp.ne.s32.totalorder %s107, %s123
    %p125 = scmp.eq.s32.totalorder %s15, 0
    %p126 = por %p124, %p125
    %p127 = scmp.le.s32.totalorder 1, %s9
    %p128 = scmp.lt.s32.totalorder %s9, 3
    %p129 = pnand %p127, %p128
    %p130 = pneg %p129
    // Predicated region
    $region9: #{conv_layer_forward.1} parent=5 // pred_check
      _
    $region10: #{conv_layer_forward.1} parent=5 // pred_check_branch
      %132 = sbr.rel (%p129) target = $region12
    $region11: #{conv_layer_forward.1} parent=5 // pred_region
      %s133 = ssub.s32 %s9, 1
      // Predicated region
      $region13: #{conv_layer_forward.1} parent=11 // pred_check
        %p134 = pneg %p70
      $region14: #{conv_layer_forward.1} parent=11 // pred_check_branch
        %136 = sbr.rel (%p134) target = $region16
      $region15: #{conv_layer_forward.1} parent=11 // pred_region
        _
      $region16: #{conv_layer_forward.1} parent=11 // pred_fallthru
        _
      // Predicated region
      $region17: #{conv_layer_forward.1} parent=11 // pred_check
        %p137 = pneg %p91
      $region18: #{conv_layer_forward.1} parent=11 // pred_check_branch
        %139 = sbr.rel (%p137) target = $region20
      $region19: #{conv_layer_forward.1} parent=11 // pred_region
        _
      $region20: #{conv_layer_forward.1} parent=11 // pred_fallthru
        _
    $region12: #{conv_layer_forward.1} parent=5 // pred_fallthru
      _
    %p140 = scmp.lt.s32.totalorder %s9, 2
    // Predicated region
    $region21: #{conv_layer_forward.1} parent=5 // pred_check
      %p141 = pneg %p140
    $region22: #{conv_layer_forward.1} parent=5 // pred_check_branch
      %143 = sbr.rel (%p141) target = $region24
    $region23: #{conv_layer_forward.1} parent=5 // pred_region
      // Predicated region
      $region25: #{conv_layer_forward.1} parent=23 // pred_check
        %p144 = pneg %p43
      $region26: #{conv_layer_forward.1} parent=23 // pred_check_branch
        %146 = sbr.rel (%p144) target = $region28
      $region27: #{conv_layer_forward.1} parent=23 // pred_region
        %p147 = scmp.lt.s32.totalorder %s16, 1
        %s148 = scalar_select %p147, %s16, 1
        %p149 = scmp.lt.s32.totalorder %s17, 0
        %s150 = scalar_select %p149, %s17, 0
        %s151 = smul.addr %s150, 3
        %s152 = smul.addr %s148, 3
        %s153 = sadd.s32 %s151, %s152
        %s154 = smul.addr %s153, 4
        %s155 = scalar_lea.vmem %s0, %s154
      $region28: #{conv_layer_forward.1} parent=23 // pred_fallthru
        _
    $region24: #{conv_layer_forward.1} parent=5 // pred_fallthru
      _
    %p156 = scmp.le.s32.totalorder 1, %s9
    %p157 = scmp.lt.s32.totalorder %s9, 3
    %p158 = pnand %p156, %p157
    %p159 = pneg %p158
    // Predicated region
    $region29: #{conv_layer_forward.1} parent=5 // pred_check
      _
    $region30: #{conv_layer_forward.1} parent=5 // pred_check_branch
      %161 = sbr.rel (%p158) target = $region32
    $region31: #{conv_layer_forward.1} parent=5 // pred_region
      %s162 = ssub.s32 %s9, 1
      %p163 = scmp.lt.s32.totalorder %s18, 1
      %s164 = scalar_select %p163, %s18, 1
      %p165 = scmp.lt.s32.totalorder %s19, 0
      %s166 = scalar_select %p165, %s19, 0
      %s167 = smul.addr %s166, 3
      %s168 = smul.addr %s164, 3
      %s169 = sadd.s32 %s167, %s168
      %s170 = smul.addr %s169, 4
      %s171 = scalar_lea.vmem %s0, %s170
      %p172 = pneg %p49
      %p173 = pneg %p46
      %p174 = pneg %p70
      %p175 = pneg %p67
      %p176 = pneg %p91
      %p177 = pneg %p88
      %p178 = pneg %p119
      %p179 = pneg %p116
      %s180 = smul.u32 2, %s19
      %p181 = scmp.lt.s32.totalorder %s18, 1
      %s182 = scalar_select %p181, %s18, 1
      %p183 = scmp.lt.s32.totalorder %s180, 1
      %s184 = scalar_select %p183, %s180, 1
      %s185 = smul.addr %s182, 2
      %s186 = sadd.s32 %s184, %s185
      %s187 = smul.addr %s186, 8
      %s188 = scalar_lea.vmem %s3, %s187
      %p189 = scmp.lt.s32.totalorder %s18, 1
      %s190 = scalar_select %p189, %s18, 1
      %p191 = scmp.lt.s32.totalorder %s19, 0
      %s192 = scalar_select %p191, %s19, 0
      %s193 = smul.addr %s192, 3
      %s194 = smul.addr %s190, 3
      %s195 = sadd.s32 %s193, %s194
      %s196 = smul.addr %s195, 4
      %s197 = scalar_lea.vmem %s0, %s196
      %s198 = smul.u32 2, %s19
      %p199 = scmp.lt.s32.totalorder %s18, 1
      %s200 = scalar_select %p199, %s18, 1
      %p201 = scmp.lt.s32.totalorder %s198, 1
      %s202 = scalar_select %p201, %s198, 1
      %s203 = smul.addr %s200, 2
      %s204 = sadd.s32 %s202, %s203
      %s205 = smul.addr %s204, 8
      %s206 = scalar_lea.vmem %s3, %s205
      %s207 = smul.u32 2, %s19
      %v209 = vld [vmem:[%s197] sm:$0xf]
      %v210 = vld [vmem:[%s197 + $0x4] sm:$0xf]
      %v211 = vld [vmem:[%s197 + $0x8] sm:$0x1]
      %v212 = vld [vmem:[%s197] sm:$0xe]
      %v215 = vunpack.c.l.b16 %v209
      %v216 = vunpack.c.l.b16 %v210
      %v217 = vpack.c.b16 %v216, %v215
      %v219 = vunpack.c.l.b16 %v211
      %v220 = vpack.c.b16 %v219, %v219
      %vm221 = vsmask.f32 7424
      %v223 = vshrl.u32 %v217, 16
      %v225 = vshll.u32 %v217, 16
      %v227 = vrot.slane %v225, 1
      %v228 = vor.u32 %v223, %v227
      %v230 = vshll.u32 %v220, 16
      %v232 = vrot.slane %v230, 1
      %v233 = vsel %vm221, %v228, %v232
      %234 = vrot.lane.b32.xlu0 %v233, 72
      %v235 = vpop.permute.xlu0 %234
      %v237 = vunpack.c.l.b16 %v212
      %v238 = vpack.c.b16 %v216, %v237
      %vm239 = vcmask 1046528
      %v240 = vrot.slane %v238, 1
      %v241 = vrot.slane %v220, 1
      %v242 = vsel %vm239, %v240, %v241
      %243 = vrot.lane.b32.xlu0 %v242, 16
      %v244 = vpop.permute.xlu0 %243
      %vm245 = vcmask 588800
      %v247 = vsel %vm245, %v217, %v235
      %vm249 = vcmask 130048
      %v251 = vsel %vm249, %v235, %v244
      %v252 = vld [vmem:[%s1] sm:$0xf]
      %v253 = vld [vmem:[%s1 + $0x4] sm:$0xf]
      %v254 = vld [vmem:[%s1 + $0x8] sm:$0xf]
      %v255 = vld [vmem:[%s1 + $0xc] sm:$0xf]
      %v256 = vld [vmem:[%s1 + $0x10] sm:$0xf]
      %v257 = vld [vmem:[%s1 + $0x14] sm:$0xf]
      %v258 = vld [vmem:[%s1 + $0x18] sm:$0xf]
      %v259 = vld [vmem:[%s1 + $0x1c] sm:$0xf]
      %v260 = vld [vmem:[%s1 + $0x20] sm:$0xf]
      %v261 = vld [vmem:[%s1 + $0x24] sm:$0xf]
      %v262 = vld [vmem:[%s1 + $0x28] sm:$0xf]
      %v263 = vld [vmem:[%s1 + $0x2c] sm:$0xf]
      %v264 = vld [vmem:[%s1 + $0x30] sm:$0xf]
      %v265 = vld [vmem:[%s1 + $0x34] sm:$0xf]
      %v266 = vld [vmem:[%s1 + $0x38] sm:$0xf]
      %v267 = vld [vmem:[%s1 + $0x3c] sm:$0xf]
      %v268 = vld [vmem:[%s1 + $0x40] sm:$0xf]
      %v269 = vld [vmem:[%s1 + $0x44] sm:$0xf]
      %v270 = vld [vmem:[%s1 + $0x48] sm:$0xf]
      %v271 = vld [vmem:[%s1 + $0x4c] sm:$0xf]
      %v272 = vld [vmem:[%s1 + $0x50] sm:$0xf]
      %v273 = vld [vmem:[%s1 + $0x54] sm:$0xf]
      %v274 = vld [vmem:[%s1 + $0x58] sm:$0xf]
      %v275 = vld [vmem:[%s1 + $0x5c] sm:$0xf]
      %v276 = vld [vmem:[%s1 + $0x60] sm:$0xf]
      %v277 = vld [vmem:[%s1 + $0x64] sm:$0xf]
      %v278 = vld [vmem:[%s1 + $0x68] sm:$0xf]
      %v279 = vld [vmem:[%s2] sm:$0x1]
      %v281 = vlaneseq
      %v282 = vshrl.u32 %v281, 7
      %v283 = vsub.s32 0, %v282
      %v284 = vrot.slane %v279, %v283
      %v313 = vunpack.c.l.b16 %v252
      %v314 = vunpack.c.l.b16 %v253
      %v315 = vunpack.c.l.b16 %v254
      %v316 = vunpack.c.l.b16 %v255
      %v317 = vunpack.c.l.b16 %v256
      %v318 = vunpack.c.l.b16 %v257
      %v319 = vunpack.c.l.b16 %v258
      %v320 = vunpack.c.l.b16 %v259
      %v321 = vunpack.c.l.b16 %v260
      %v322 = vunpack.c.l.b16 %v261
      %v323 = vunpack.c.l.b16 %v262
      %v324 = vunpack.c.l.b16 %v263
      %v325 = vunpack.c.l.b16 %v264
      %v326 = vunpack.c.l.b16 %v265
      %v327 = vunpack.c.l.b16 %v266
      %v328 = vunpack.c.l.b16 %v267
      %v329 = vunpack.c.l.b16 %v268
      %v330 = vunpack.c.l.b16 %v269
      %v331 = vunpack.c.l.b16 %v270
      %v332 = vunpack.c.l.b16 %v271
      %v333 = vunpack.c.l.b16 %v272
      %v334 = vunpack.c.l.b16 %v273
      %v335 = vunpack.c.l.b16 %v274
      %v336 = vunpack.c.l.b16 %v275
      %v337 = vunpack.c.l.b16 %v276
      %v338 = vunpack.c.l.b16 %v277
      %v339 = vunpack.c.l.b16 %v278
      %v340 = vpack.c.b16 %v314, %v313
      %v341 = vpack.c.b16 %v316, %v315
      %v342 = vpack.c.b16 %v318, %v317
      %v343 = vpack.c.b16 %v320, %v319
      %v344 = vpack.c.b16 %v322, %v321
      %v345 = vpack.c.b16 %v324, %v323
      %v346 = vpack.c.b16 %v326, %v325
      %v347 = vpack.c.b16 %v328, %v327
      %v348 = vpack.c.b16 %v330, %v329
      %v349 = vpack.c.b16 %v332, %v331
      %v350 = vpack.c.b16 %v334, %v333
      %v351 = vpack.c.b16 %v336, %v335
      %v352 = vpack.c.b16 %v338, %v337
      %v353 = vpack.c.b16 %v339, %v339
      %vm367 = vcmask 719872
      %v368 = vsel %vm367, %v251, 0
      %vm370 = vcmask 1043456
      %v372 = vsel %vm370, %v353, 0
      %374 = vmatprep.subr.bf16.mxu0 0
      %375 = vmatpush1.bf16.msra.mxu0 %v340
      %376 = vmatprep.subr.bf16.mxu0 0
      %377 = vmatpush1.bf16.msra.mxu0 %v341
      %378 = vmatprep.subr.bf16.mxu0 0
      %379 = vmatpush1.bf16.msra.mxu0 %v342
      %380 = vmatprep.subr.bf16.mxu0 0
      %381 = vmatpush1.bf16.msra.mxu0 %v343
      %382 = vmatprep.subr.bf16.mxu0 0
      %383 = vmatpush1.bf16.msra.mxu0 %v344
      %384 = vmatprep.subr.bf16.mxu0 0
      %385 = vmatpush1.bf16.msra.mxu0 %v345
      %386 = vmatprep.subr.bf16.mxu0 0
      %387 = vmatpush1.bf16.msra.mxu0 %v346
      %388 = vmatprep.subr.bf16.mxu0 0
      %389 = vmatpush1.bf16.msra.mxu0 %v347
      %390 = vmatprep.subr.bf16.mxu0 0
      %391 = vmatpush1.bf16.msra.mxu0 %v348
      %392 = vmatprep.subr.bf16.mxu0 0
      %393 = vmatpush1.bf16.msra.mxu0 %v349
      %394 = vmatprep.subr.bf16.mxu0 0
      %395 = vmatpush1.bf16.msra.mxu0 %v350
      %396 = vmatprep.subr.bf16.mxu0 0
      %397 = vmatpush1.bf16.msra.mxu0 %v351
      %398 = vmatprep.subr.bf16.mxu0 0
      %399 = vmatpush1.bf16.msra.mxu0 %v352
      %400 = vmatprep.subr.bf16.mxu0 0
      %401 = vmatpush1.bf16.msra.mxu0 %v372
      %402 = vmatprep.subr.bf16.mxu0 0
      %403 = vmatpush1.bf16.msra.mxu0 0
      %404 = vmatprep.subr.bf16.mxu0 0
      %405 = vmatpush1.bf16.msra.mxu0 0
      %406 = vmatprep.mubr.bf16.mxu0 %v368
      %407 = vmatmul.mubr.bf16.gmra.mrb[0].mxu0 %v247
      %v408 = vpop.f32.mrb[0].mxu0
      %v409 = vadd.f32 %v284, %v408
      %v410 = vpop.f32.mrb[0].mxu0
      %v411 = vpop.f32.mrb[0].mxu0
      %v412 = vadd.f32 %v284, %v411
      %v413 = vpop.f32.mrb[0].mxu0
      %414 = vdwg.mxu0
      %415 = vst [vmem:[%s206] sm:$0xff] %v409
      %416 = vst [vmem:[%s206 + $0x8] sm:$0xff] %v412
      %s417 = smul.u32 2, %s19
      %p418 = scmp.lt.s32.totalorder %s18, 1
      %s419 = scalar_select %p418, %s18, 1
      %p420 = scmp.lt.s32.totalorder %s417, 1
      %s421 = scalar_select %p420, %s417, 1
      %s422 = smul.addr %s419, 2
      %s423 = sadd.s32 %s421, %s422
      %s424 = smul.addr %s423, 8
      %s425 = scalar_lea.vmem %s3, %s424
      // Predicated region
      $region33: #{conv_layer_forward.1} parent=31 // pred_check
        %p426 = pneg %p116
      $region34: #{conv_layer_forward.1} parent=31 // pred_check_branch
        %428 = sbr.rel (%p426) target = $region36
      $region35: #{conv_layer_forward.1} parent=31 // pred_region
        %s429 = smul.u32 2, %s19
      $region36: #{conv_layer_forward.1} parent=31 // pred_fallthru
        _
    $region32: #{conv_layer_forward.1} parent=5 // pred_fallthru
      _
    %p430 = scmp.le.s32.totalorder 2, %s9
    // Predicated region
    $region37: #{conv_layer_forward.1} parent=5 // pred_check
      %p431 = pneg %p430
    $region38: #{conv_layer_forward.1} parent=5 // pred_check_branch
      %433 = sbr.rel (%p431) target = $region40
    $region39: #{conv_layer_forward.1} parent=5 // pred_region
      %s434 = ssub.s32 %s9, 2
      // Predicated region
      $region41: #{conv_layer_forward.1} parent=39 // pred_check
        %p435 = pneg %p122
      $region42: #{conv_layer_forward.1} parent=39 // pred_check_branch
        %437 = sbr.rel (%p435) target = $region44
      $region43: #{conv_layer_forward.1} parent=39 // pred_region
        %s438 = smul.u32 2, %s21
        %p439 = scmp.lt.s32.totalorder %s20, 1
        %s440 = scalar_select %p439, %s20, 1
        %p441 = scmp.lt.s32.totalorder %s438, 1
        %s442 = scalar_select %p441, %s438, 1
        %s443 = smul.addr %s440, 2
        %s444 = sadd.s32 %s442, %s443
        %s445 = smul.addr %s444, 8
        %s446 = scalar_lea.vmem %s3, %s445
      $region44: #{conv_layer_forward.1} parent=39 // pred_fallthru
        _
    $region40: #{conv_layer_forward.1} parent=5 // pred_fallthru
      _
  $region6: #{conv_layer_forward.1} parent=0 // loop_footer
    %s13 = sadd.s32 1, %s9
  $region7: #{conv_layer_forward.1} parent=0 // loop_footer_branch
    %8 = sbr.rel target = $region3
  $region8: #{conv_layer_forward.1} parent=0 // loop_exit
    _

</llo_original>
